<compile_context>
chip_gen: v7x
topology: tpu7x:2x2x1
jax: 0.10.0
libtpu: 0.0.40
codegen_flags: <defaults>
</compile_context>

<pallas_src>
import math
import functools

import jax
import jax.numpy as jnp
from jax.experimental import pallas as pl
from jax.experimental.pallas import tpu as pltpu


def _round_up(x, m):
    return ((x + m - 1) // m) * m


# --------------------------- Linear (x @ W + b) ---------------------------

def linear_kernel(x_ref, w_ref, b_ref, o_ref):
    # x_ref: (tm, K) bf16, w_ref: (K, tn) bf16, b_ref: (1, tn) f32, o_ref: (tm, tn)
    acc = jnp.dot(x_ref[...], w_ref[...], preferred_element_type=jnp.float32)
    o_ref[...] = (acc + b_ref[...]).astype(o_ref.dtype)


def linear_pallas(x2d, w, b, *, tm=256, out_dtype=None, resident_w_bytes=8 << 20):
    """y = x2d @ w + b with bf16 MXU inputs and f32 accumulation.

    x2d: (M, K), w: (K, N), b: (N,) -> (M, N) in `out_dtype`.
    """
    M, K = x2d.shape
    _, N = w.shape
    out_dtype = out_dtype or x2d.dtype

    # bf16 operands (MXU-native, half the HBM/VMEM bytes); bias stays f32.
    x_bf = x2d.astype(jnp.bfloat16)
    w_bf = w.astype(jnp.bfloat16)
    b_f32 = b.astype(jnp.float32)

    # M tiled (8-aligned); N padded lane-dense to a 128 multiple.
    tm_eff = min(tm, _round_up(M, 8))
    Mp = _round_up(M, tm_eff)
    Np = _round_up(N, 128)
    if K * Np * 2 <= resident_w_bytes:
        tn_eff = Np                      # whole weight resident in one VMEM block
    else:
        tn_eff = 512                     # tile N; W still not re-streamed along M
        Np = _round_up(N, tn_eff)

    xp = x_bf if Mp == M else jnp.pad(x_bf, ((0, Mp - M), (0, 0)))
    wp = w_bf if Np == N else jnp.pad(w_bf, ((0, 0), (0, Np - N)))
    bp = (b_f32 if Np == N else jnp.pad(b_f32, (0, Np - N))).reshape(1, Np)

    gn, gm = Np // tn_eff, Mp // tm_eff
    out_itemsize = jnp.dtype(out_dtype).itemsize

    cost = pl.CostEstimate(
        flops=2 * M * K * N,
        transcendentals=0,
        bytes_accessed=int(gn * Mp * K * 2 + K * Np * 2 + Mp * Np * out_itemsize + Np * 4),
    )
    # Double-buffered blocks + margin; covers v5e's 16 MiB default scoped limit,
    # stays under v7x's 64 MiB physical VMEM.
    vmem_need = 2 * (tm_eff * K * 2 + K * tn_eff * 2 + tn_eff * 4
                     + tm_eff * tn_eff * out_itemsize) + (2 << 20)
    vmem_limit = int(min(max(vmem_need, 32 << 20), 64 << 20))

    out = pl.pallas_call(
        linear_kernel,
        out_shape=jax.ShapeDtypeStruct((Mp, Np), out_dtype),
        grid_spec=pltpu.PrefetchScalarGridSpec(
            num_scalar_prefetch=0,
            # N outer, M inner: the W (and bias) block index is constant along
            # the inner axis, so the weight is DMA'd once per N tile, not once
            # per M tile.
            grid=(gn, gm),
            in_specs=[
                pl.BlockSpec((tm_eff, K), lambda j, i: (i, 0)),
                pl.BlockSpec((K, tn_eff), lambda j, i: (0, j)),
                pl.BlockSpec((1, tn_eff), lambda j, i: (0, j)),
            ],
            out_specs=pl.BlockSpec((tm_eff, tn_eff), lambda j, i: (i, j)),
        ),
        compiler_params=pltpu.CompilerParams(
            dimension_semantics=("parallel", "parallel"),
            vmem_limit_bytes=vmem_limit,
        ),
        cost_estimate=cost,
    )(xp, wp, bp)

    return out[:M, :N]


# ------------------------ Attention (per batch, all heads) ------------------------

def attention_kernel(qkv_ref, o_ref, *, num_heads, head_dim, hidden_size, scale):
    # qkv_ref: (1, S, 3*hidden) bf16 block (one batch), layout [q | k | v].
    # o_ref:   (1, S, hidden) block written directly in merged-head layout.
    for h in range(num_heads):
        q0 = h * head_dim
        k0 = hidden_size + h * head_dim
        v0 = 2 * hidden_size + h * head_dim
        # Fold 1/sqrt(d) into q (S*d multiply instead of an S*S scale pass).
        q = qkv_ref[0, :, q0:q0 + head_dim] * scale            # (S, d) bf16
        k = qkv_ref[0, :, k0:k0 + head_dim]                     # (S, d) bf16
        v = qkv_ref[0, :, v0:v0 + head_dim]                     # (S, d) bf16
        # scores = q @ k^T (contract over d, no explicit transpose), f32 accumulation.
        s = jax.lax.dot_general(
            q, k, (((1,), (1,)), ((), ())),
            preferred_element_type=jnp.float32)                 # (S, S) f32
        m = jnp.max(s, axis=-1, keepdims=True)
        p = jnp.exp(s - m)
        l = jnp.sum(p, axis=-1, keepdims=True)
        # Unnormalized probs -> bf16 for the second MXU pass; normalize the small
        # (S, d) ctx with an EUP reciprocal instead of dividing the (S, S) tile.
        ctx = jnp.dot(p.astype(jnp.bfloat16), v,
                      preferred_element_type=jnp.float32)       # (S, d) f32
        ctx = ctx * pl.reciprocal(l, approx=True)
        o_ref[0, :, q0:q0 + head_dim] = ctx.astype(o_ref.dtype)


def attention_pallas(qkv, num_heads, scale, out_dtype=jnp.bfloat16):
    """qkv: (B, S, 3*hidden) fused projection -> (B, S, hidden) merged-head ctx."""
    B, S, three_h = qkv.shape
    hidden = three_h // 3
    head_dim = hidden // num_heads

    kern = functools.partial(
        attention_kernel, num_heads=num_heads, head_dim=head_dim,
        hidden_size=hidden, scale=scale)

    out_itemsize = jnp.dtype(out_dtype).itemsize
    cost = pl.CostEstimate(
        flops=4 * B * num_heads * S * S * head_dim,
        transcendentals=B * num_heads * S * S,
        bytes_accessed=int(B * S * three_h * qkv.dtype.itemsize
                           + B * S * hidden * out_itemsize),
    )
    vmem_need = 2 * (S * three_h * qkv.dtype.itemsize
                     + S * hidden * out_itemsize) + 4 * S * S + (2 << 20)
    vmem_limit = int(min(max(vmem_need, 32 << 20), 64 << 20))

    return pl.pallas_call(
        kern,
        out_shape=jax.ShapeDtypeStruct((B, S, hidden), out_dtype),
        grid_spec=pltpu.PrefetchScalarGridSpec(
            num_scalar_prefetch=0,
            grid=(B,),
            in_specs=[pl.BlockSpec((1, S, three_h), lambda b: (b, 0, 0))],
            out_specs=pl.BlockSpec((1, S, hidden), lambda b: (b, 0, 0)),
        ),
        compiler_params=pltpu.CompilerParams(
            dimension_semantics=("parallel",),
            vmem_limit_bytes=vmem_limit,
        ),
        cost_estimate=cost,
    )(qkv)


# ------------------------------ Full forward ------------------------------

def faster_multi_head_attention(x, params, num_heads):
    """x: (B, S, hidden) -> attention_output (B, S, hidden).

    Matches the PyTorch forward with output_attentions=False; both dropouts are
    identity (inference / prob=0.0).  attention_probs are never materialized.
    """
    B, S, hidden = x.shape
    head = hidden // num_heads
    scale = 1.0 / math.sqrt(head)

    # 1) Fused QKV projection (bf16 output feeds the attention kernel directly).
    qkv = linear_pallas(x.reshape(B * S, hidden), params["qkv_w"], params["qkv_b"],
                        out_dtype=jnp.bfloat16)
    qkv = qkv.reshape(B, S, 3 * hidden)

    # 2) Attention: heads are split/merged inside the kernel via column offsets,
    #    so there are no JAX-level transposes or extra HBM round trips.
    ctx = attention_pallas(qkv, num_heads, scale, out_dtype=jnp.bfloat16)

    # 3) Output projection (back to the input dtype).
    out = linear_pallas(ctx.reshape(B * S, hidden), params["out_w"], params["out_b"],
                        out_dtype=x.dtype)
    return out.reshape(B, S, hidden)


if __name__ == "__main__":
    config = dict(hidden_size=32, num_attention_heads=4, qkv_bias=True,
                  attention_probs_dropout_prob=0.0, hidden_dropout_prob=0.0)
    B, S = 2, 8
    hidden = config["hidden_size"]
    H = config["num_attention_heads"]

    key = jax.random.PRNGKey(0)
    kx, k1, k2, k3, k4 = jax.random.split(key, 5)
    x = jax.random.normal(kx, (B, S, hidden), dtype=jnp.float32)
    params = {
        "qkv_w": jax.random.normal(k1, (hidden, 3 * hidden), jnp.float32) * 0.02,
        "qkv_b": jax.random.normal(k2, (3 * hidden,), jnp.float32) * 0.02,
        "out_w": jax.random.normal(k3, (hidden, hidden), jnp.float32) * 0.02,
        "out_b": jax.random.normal(k4, (hidden,), jnp.float32) * 0.02,
    }

    fwd = jax.jit(functools.partial(faster_multi_head_attention, num_heads=H))
    out = jax.block_until_ready(fwd(x, params))

    # Pure-JAX f32 reference (same math as the PyTorch forward, dropout = identity).
    # Tolerance is loosened vs. the previous f32 kernel because the Pallas path
    # uses bf16 MXU inputs (f32 accumulation).
    def ref_fn(x):
        with jax.default_matmul_precision("highest"):
            qkv = x @ params["qkv_w"] + params["qkv_b"]
            q, k, v = jnp.split(qkv, 3, axis=-1)
            d = hidden // H

            def heads(t):
                return t.reshape(B, S, H, d).transpose(0, 2, 1, 3)

            q, k, v = heads(q), heads(k), heads(v)
            scores = jnp.einsum("bhtd,bhsd->bhts", q, k) / math.sqrt(d)
            probs = jax.nn.softmax(scores, axis=-1)
            ctx = jnp.einsum("bhts,bhsd->bhtd", probs, v)
            ctx = ctx.transpose(0, 2, 1, 3).reshape(B, S, hidden)
            return ctx @ params["out_w"] + params["out_b"]

    ref = ref_fn(x)
    assert out.shape == (B, S, hidden)
    max_err = float(jnp.max(jnp.abs(out - ref)))
    assert jnp.allclose(out, ref, atol=5e-3, rtol=5e-2), max_err

    print("KERNEL_OK")
</pallas_src>

<mosaic_0001>
module attributes {stable_mosaic.version = 11 : i64} {
  func.func @linear_kernel(%arg0: i32, %arg1: i32, %arg2: memref<16x32xbf16, #tpu.memory_space<vmem>>, %arg3: memref<32x128xbf16, #tpu.memory_space<vmem>>, %arg4: memref<1x128xf32, #tpu.memory_space<vmem>>, %arg5: memref<16x128xbf16, #tpu.memory_space<vmem>>) attributes {dimension_semantics = [#tpu.dimension_semantics<parallel>, #tpu.dimension_semantics<parallel>], iteration_bounds = array<i64: 1, 1>, scalar_prefetch = 0 : i64, scratch_operands = 0 : i64, tpu.core_type = #tpu.core_type<tc>, window_params = [{transform_indices = @transform_0, window_bounds = array<i64: 16, 32>}, {transform_indices = @transform_1, window_bounds = array<i64: 32, 128>}, {transform_indices = @transform_2, window_bounds = array<i64: 1, 128>}, {transform_indices = @transform_3, window_bounds = array<i64: 16, 128>}]} {
    %c0 = arith.constant 0 : index
    %c0_0 = arith.constant 0 : index
    %0 = vector.load %arg2[%c0, %c0_0] : memref<16x32xbf16, #tpu.memory_space<vmem>>, vector<16x32xbf16>
    %c0_1 = arith.constant 0 : index
    %c0_2 = arith.constant 0 : index
    %1 = vector.load %arg3[%c0_1, %c0_2] : memref<32x128xbf16, #tpu.memory_space<vmem>>, vector<32x128xbf16>
    %cst = arith.constant dense<0.000000e+00> : vector<16x128xf32>
    %2 = tpu.matmul %0, %1, %cst {dimension_numbers = #tpu.dot_dimension_numbers<[1], [0], [0], [1], [0, 0, 1, 1], [], []>} : vector<16x32xbf16>, vector<32x128xbf16>, vector<16x128xf32> -> vector<16x128xf32>
    %c0_3 = arith.constant 0 : index
    %c0_4 = arith.constant 0 : index
    %3 = vector.load %arg4[%c0_3, %c0_4] : memref<1x128xf32, #tpu.memory_space<vmem>>, vector<1x128xf32>
    %4 = vector.broadcast %3 : vector<1x128xf32> to vector<16x128xf32>
    %5 = arith.addf %2, %4 : vector<16x128xf32>
    %6 = arith.truncf %5 : vector<16x128xf32> to vector<16x128xbf16>
    %c0_5 = arith.constant 0 : index
    %c0_6 = arith.constant 0 : index
    %7 = vector.load %arg5[%c0_5, %c0_6] : memref<16x128xbf16, #tpu.memory_space<vmem>>, vector<16x128xbf16>
    tpu.vector_store %arg5[%c0_5, %c0_6], %6 {strides = array<i32>} : memref<16x128xbf16, #tpu.memory_space<vmem>>, vector<16x128xbf16>,
    return
  }
  func.func @transform_0(%arg0: i32, %arg1: i32) -> (i32, i32) {
    %c0_i32 = arith.constant 0 : i32
    %c0_i32_0 = arith.constant 0 : i32
    return %arg1, %c0_i32 : i32, i32
  }
  func.func @transform_1(%arg0: i32, %arg1: i32) -> (i32, i32) {
    %c0_i32 = arith.constant 0 : i32
    %c0_i32_0 = arith.constant 0 : i32
    return %c0_i32, %arg0 : i32, i32
  }
  func.func @transform_2(%arg0: i32, %arg1: i32) -> (i32, i32) {
    %c0_i32 = arith.constant 0 : i32
    %c0_i32_0 = arith.constant 0 : i32
    return %c0_i32, %arg0 : i32, i32
  }
  func.func @transform_3(%arg0: i32, %arg1: i32) -> (i32, i32) {
    %c0_i32 = arith.constant 0 : i32
    return %arg1, %arg0 : i32, i32
  }
}

module attributes {stable_mosaic.version = 11 : i64} {
  func.func @attention_kernel(%arg0: i32, %arg1: memref<1x8x96xbf16, #tpu.memory_space<vmem>>, %arg2: memref<1x8x32xbf16, #tpu.memory_space<vmem>>) attributes {dimension_semantics = [#tpu.dimension_semantics<parallel>], iteration_bounds = array<i64: 2>, scalar_prefetch = 0 : i64, scratch_operands = 0 : i64, tpu.core_type = #tpu.core_type<tc>, window_params = [{transform_indices = @transform_0, window_bounds = array<i64: 1, 8, 96>}, {transform_indices = @transform_1, window_bounds = array<i64: 1, 8, 32>}]} {
    %c0 = arith.constant 0 : index
    %c0_0 = arith.constant 0 : index
    %c0_1 = arith.constant 0 : index
    %0 = vector.load %arg1[%c0, %c0_0, %c0_1] : memref<1x8x96xbf16, #tpu.memory_space<vmem>>, vector<1x8x8xbf16>
    %1 = vector.shape_cast %0 : vector<1x8x8xbf16> to vector<8x8xbf16>
    %cst = arith.constant 3.535160e-01 : bf16
    %2 = vector.broadcast %cst : bf16 to vector<8x8xbf16>
    %3 = arith.mulf %1, %2 : vector<8x8xbf16>
    %c0_2 = arith.constant 0 : index
    %c0_3 = arith.constant 0 : index
    %c32 = arith.constant 32 : index
    %4 = vector.load %arg1[%c0_2, %c0_3, %c32] : memref<1x8x96xbf16, #tpu.memory_space<vmem>>, vector<1x8x8xbf16>
    %5 = vector.shape_cast %4 : vector<1x8x8xbf16> to vector<8x8xbf16>
    %c0_4 = arith.constant 0 : index
    %c0_5 = arith.constant 0 : index
    %c64 = arith.constant 64 : index
    %6 = vector.load %arg1[%c0_4, %c0_5, %c64] : memref<1x8x96xbf16, #tpu.memory_space<vmem>>, vector<1x8x8xbf16>
    %7 = vector.shape_cast %6 : vector<1x8x8xbf16> to vector<8x8xbf16>
    %cst_6 = arith.constant dense<0.000000e+00> : vector<8x8xf32>
    %8 = tpu.matmul %3, %5, %cst_6 {dimension_numbers = #tpu.dot_dimension_numbers<[1], [1], [0], [0], [0, 0, 1, 0], [], []>} : vector<8x8xbf16>, vector<8x8xbf16>, vector<8x8xf32> -> vector<8x8xf32>
    %cst_7 = arith.constant dense<0xFF800000> : vector<8xf32>
    %9 = vector.multi_reduction <maximumf>, %8, %cst_7 [1] : vector<8x8xf32> to vector<8xf32>
    %10 = vector.shape_cast %9 : vector<8xf32> to vector<8x1xf32>
    %11 = vector.broadcast %10 : vector<8x1xf32> to vector<8x8xf32>
    %12 = arith.subf %8, %11 : vector<8x8xf32>
    %13 = math.exp %12 : vector<8x8xf32>
    %cst_8 = arith.constant dense<0.000000e+00> : vector<8xf32>
    %14 = vector.multi_reduction <add>, %13, %cst_8 [1] : vector<8x8xf32> to vector<8xf32>
    %15 = vector.shape_cast %14 : vector<8xf32> to vector<8x1xf32>
    %16 = arith.truncf %13 : vector<8x8xf32> to vector<8x8xbf16>
    %cst_9 = arith.constant dense<0.000000e+00> : vector<8x8xf32>
    %17 = tpu.matmul %16, %7, %cst_9 {dimension_numbers = #tpu.dot_dimension_numbers<[1], [0], [0], [1], [0, 0, 1, 1], [], []>} : vector<8x8xbf16>, vector<8x8xbf16>, vector<8x8xf32> -> vector<8x8xf32>
    %18 = tpu.reciprocal %15 {approx = true} : vector<8x1xf32> -> vector<8x1xf32>
    %19 = vector.broadcast %18 : vector<8x1xf32> to vector<8x8xf32>
    %20 = arith.mulf %17, %19 : vector<8x8xf32>
    %21 = arith.truncf %20 : vector<8x8xf32> to vector<8x8xbf16>
    %c0_10 = arith.constant 0 : index
    %c0_11 = arith.constant 0 : index
    %c0_12 = arith.constant 0 : index
    %22 = vector.load %arg2[%c0_10, %c0_11, %c0_12] : memref<1x8x32xbf16, #tpu.memory_space<vmem>>, vector<1x8x8xbf16>
    %23 = vector.shape_cast %22 : vector<1x8x8xbf16> to vector<8x8xbf16>
    %24 = vector.shape_cast %21 : vector<8x8xbf16> to vector<1x8x8xbf16>
    tpu.vector_store %arg2[%c0_10, %c0_11, %c0_12], %24 {strides = array<i32>} : memref<1x8x32xbf16, #tpu.memory_space<vmem>>, vector<1x8x8xbf16>,
    %c0_13 = arith.constant 0 : index
    %c0_14 = arith.constant 0 : index
    %c8 = arith.constant 8 : index
    %25 = vector.load %arg1[%c0_13, %c0_14, %c8] : memref<1x8x96xbf16, #tpu.memory_space<vmem>>, vector<1x8x8xbf16>
    %26 = vector.shape_cast %25 : vector<1x8x8xbf16> to vector<8x8xbf16>
    %cst_15 = arith.constant 3.535160e-01 : bf16
    %27 = vector.broadcast %cst_15 : bf16 to vector<8x8xbf16>
    %28 = arith.mulf %26, %27 : vector<8x8xbf16>
    %c0_16 = arith.constant 0 : index
    %c0_17 = arith.constant 0 : index
    %c40 = arith.constant 40 : index
    %29 = vector.load %arg1[%c0_16, %c0_17, %c40] : memref<1x8x96xbf16, #tpu.memory_space<vmem>>, vector<1x8x8xbf16>
    %30 = vector.shape_cast %29 : vector<1x8x8xbf16> to vector<8x8xbf16>
    %c0_18 = arith.constant 0 : index
    %c0_19 = arith.constant 0 : index
    %c72 = arith.constant 72 : index
    %31 = vector.load %arg1[%c0_18, %c0_19, %c72] : memref<1x8x96xbf16, #tpu.memory_space<vmem>>, vector<1x8x8xbf16>
    %32 = vector.shape_cast %31 : vector<1x8x8xbf16> to vector<8x8xbf16>
    %cst_20 = arith.constant dense<0.000000e+00> : vector<8x8xf32>
    %33 = tpu.matmul %28, %30, %cst_20 {dimension_numbers = #tpu.dot_dimension_numbers<[1], [1], [0], [0], [0, 0, 1, 0], [], []>} : vector<8x8xbf16>, vector<8x8xbf16>, vector<8x8xf32> -> vector<8x8xf32>
    %cst_21 = arith.constant dense<0xFF800000> : vector<8xf32>
    %34 = vector.multi_reduction <maximumf>, %33, %cst_21 [1] : vector<8x8xf32> to vector<8xf32>
    %35 = vector.shape_cast %34 : vector<8xf32> to vector<8x1xf32>
    %36 = vector.broadcast %35 : vector<8x1xf32> to vector<8x8xf32>
    %37 = arith.subf %33, %36 : vector<8x8xf32>
    %38 = math.exp %37 : vector<8x8xf32>
    %cst_22 = arith.constant dense<0.000000e+00> : vector<8xf32>
    %39 = vector.multi_reduction <add>, %38, %cst_22 [1] : vector<8x8xf32> to vector<8xf32>
    %40 = vector.shape_cast %39 : vector<8xf32> to vector<8x1xf32>
    %41 = arith.truncf %38 : vector<8x8xf32> to vector<8x8xbf16>
    %cst_23 = arith.constant dense<0.000000e+00> : vector<8x8xf32>
    %42 = tpu.matmul %41, %32, %cst_23 {dimension_numbers = #tpu.dot_dimension_numbers<[1], [0], [0], [1], [0, 0, 1, 1], [], []>} : vector<8x8xbf16>, vector<8x8xbf16>, vector<8x8xf32> -> vector<8x8xf32>
    %43 = tpu.reciprocal %40 {approx = true} : vector<8x1xf32> -> vector<8x1xf32>
    %44 = vector.broadcast %43 : vector<8x1xf32> to vector<8x8xf32>
    %45 = arith.mulf %42, %44 : vector<8x8xf32>
    %46 = arith.truncf %45 : vector<8x8xf32> to vector<8x8xbf16>
    %c0_24 = arith.constant 0 : index
    %c0_25 = arith.constant 0 : index
    %c8_26 = arith.constant 8 : index
    %47 = vector.load %arg2[%c0_24, %c0_25, %c8_26] : memref<1x8x32xbf16, #tpu.memory_space<vmem>>, vector<1x8x8xbf16>
    %48 = vector.shape_cast %47 : vector<1x8x8xbf16> to vector<8x8xbf16>
    %49 = vector.shape_cast %46 : vector<8x8xbf16> to vector<1x8x8xbf16>
    tpu.vector_store %arg2[%c0_24, %c0_25, %c8_26], %49 {strides = array<i32>} : memref<1x8x32xbf16, #tpu.memory_space<vmem>>, vector<1x8x8xbf16>,
    %c0_27 = arith.constant 0 : index
    %c0_28 = arith.constant 0 : index
    %c16 = arith.constant 16 : index
    %50 = vector.load %arg1[%c0_27, %c0_28, %c16] : memref<1x8x96xbf16, #tpu.memory_space<vmem>>, vector<1x8x8xbf16>
    %51 = vector.shape_cast %50 : vector<1x8x8xbf16> to vector<8x8xbf16>
    %cst_29 = arith.constant 3.535160e-01 : bf16
    %52 = vector.broadcast %cst_29 : bf16 to vector<8x8xbf16>
    %53 = arith.mulf %51, %52 : vector<8x8xbf16>
    %c0_30 = arith.constant 0 : index
    %c0_31 = arith.constant 0 : index
    %c48 = arith.constant 48 : index
    %54 = vector.load %arg1[%c0_30, %c0_31, %c48] : memref<1x8x96xbf16, #tpu.memory_space<vmem>>, vector<1x8x8xbf16>
    %55 = vector.shape_cast %54 : vector<1x8x8xbf16> to vector<8x8xbf16>
    %c0_32 = arith.constant 0 : index
    %c0_33 = arith.constant 0 : index
    %c80 = arith.constant 80 : index
    %56 = vector.load %arg1[%c0_32, %c0_33, %c80] : memref<1x8x96xbf16, #tpu.memory_space<vmem>>, vector<1x8x8xbf16>
    %57 = vector.shape_cast %56 : vector<1x8x8xbf16> to vector<8x8xbf16>
    %cst_34 = arith.constant dense<0.000000e+00> : vector<8x8xf32>
    %58 = tpu.matmul %53, %55, %cst_34 {dimension_numbers = #tpu.dot_dimension_numbers<[1], [1], [0], [0], [0, 0, 1, 0], [], []>} : vector<8x8xbf16>, vector<8x8xbf16>, vector<8x8xf32> -> vector<8x8xf32>
    %cst_35 = arith.constant dense<0xFF800000> : vector<8xf32>
    %59 = vector.multi_reduction <maximumf>, %58, %cst_35 [1] : vector<8x8xf32> to vector<8xf32>
    %60 = vector.shape_cast %59 : vector<8xf32> to vector<8x1xf32>
    %61 = vector.broadcast %60 : vector<8x1xf32> to vector<8x8xf32>
    %62 = arith.subf %58, %61 : vector<8x8xf32>
    %63 = math.exp %62 : vector<8x8xf32>
    %cst_36 = arith.constant dense<0.000000e+00> : vector<8xf32>
    %64 = vector.multi_reduction <add>, %63, %cst_36 [1] : vector<8x8xf32> to vector<8xf32>
    %65 = vector.shape_cast %64 : vector<8xf32> to vector<8x1xf32>
    %66 = arith.truncf %63 : vector<8x8xf32> to vector<8x8xbf16>
    %cst_37 = arith.constant dense<0.000000e+00> : vector<8x8xf32>
    %67 = tpu.matmul %66, %57, %cst_37 {dimension_numbers = #tpu.dot_dimension_numbers<[1], [0], [0], [1], [0, 0, 1, 1], [], []>} : vector<8x8xbf16>, vector<8x8xbf16>, vector<8x8xf32> -> vector<8x8xf32>
    %68 = tpu.reciprocal %65 {approx = true} : vector<8x1xf32> -> vector<8x1xf32>
    %69 = vector.broadcast %68 : vector<8x1xf32> to vector<8x8xf32>
    %70 = arith.mulf %67, %69 : vector<8x8xf32>
    %71 = arith.truncf %70 : vector<8x8xf32> to vector<8x8xbf16>
    %c0_38 = arith.constant 0 : index
    %c0_39 = arith.constant 0 : index
    %c16_40 = arith.constant 16 : index
    %72 = vector.load %arg2[%c0_38, %c0_39, %c16_40] : memref<1x8x32xbf16, #tpu.memory_space<vmem>>, vector<1x8x8xbf16>
    %73 = vector.shape_cast %72 : vector<1x8x8xbf16> to vector<8x8xbf16>
    %74 = vector.shape_cast %71 : vector<8x8xbf16> to vector<1x8x8xbf16>
    tpu.vector_store %arg2[%c0_38, %c0_39, %c16_40], %74 {strides = array<i32>} : memref<1x8x32xbf16, #tpu.memory_space<vmem>>, vector<1x8x8xbf16>,
    %c0_41 = arith.constant 0 : index
    %c0_42 = arith.constant 0 : index
    %c24 = arith.constant 24 : index
    %75 = vector.load %arg1[%c0_41, %c0_42, %c24] : memref<1x8x96xbf16, #tpu.memory_space<vmem>>, vector<1x8x8xbf16>
    %76 = vector.shape_cast %75 : vector<1x8x8xbf16> to vector<8x8xbf16>
    %cst_43 = arith.constant 3.535160e-01 : bf16
    %77 = vector.broadcast %cst_43 : bf16 to vector<8x8xbf16>
    %78 = arith.mulf %76, %77 : vector<8x8xbf16>
    %c0_44 = arith.constant 0 : index
    %c0_45 = arith.constant 0 : index
    %c56 = arith.constant 56 : index
    %79 = vector.load %arg1[%c0_44, %c0_45, %c56] : memref<1x8x96xbf16, #tpu.memory_space<vmem>>, vector<1x8x8xbf16>
    %80 = vector.shape_cast %79 : vector<1x8x8xbf16> to vector<8x8xbf16>
    %c0_46 = arith.constant 0 : index
    %c0_47 = arith.constant 0 : index
    %c88 = arith.constant 88 : index
    %81 = vector.load %arg1[%c0_46, %c0_47, %c88] : memref<1x8x96xbf16, #tpu.memory_space<vmem>>, vector<1x8x8xbf16>
    %82 = vector.shape_cast %81 : vector<1x8x8xbf16> to vector<8x8xbf16>
    %cst_48 = arith.constant dense<0.000000e+00> : vector<8x8xf32>
    %83 = tpu.matmul %78, %80, %cst_48 {dimension_numbers = #tpu.dot_dimension_numbers<[1], [1], [0], [0], [0, 0, 1, 0], [], []>} : vector<8x8xbf16>, vector<8x8xbf16>, vector<8x8xf32> -> vector<8x8xf32>
    %cst_49 = arith.constant dense<0xFF800000> : vector<8xf32>
    %84 = vector.multi_reduction <maximumf>, %83, %cst_49 [1] : vector<8x8xf32> to vector<8xf32>
    %85 = vector.shape_cast %84 : vector<8xf32> to vector<8x1xf32>
    %86 = vector.broadcast %85 : vector<8x1xf32> to vector<8x8xf32>
    %87 = arith.subf %83, %86 : vector<8x8xf32>
    %88 = math.exp %87 : vector<8x8xf32>
    %cst_50 = arith.constant dense<0.000000e+00> : vector<8xf32>
    %89 = vector.multi_reduction <add>, %88, %cst_50 [1] : vector<8x8xf32> to vector<8xf32>
    %90 = vector.shape_cast %89 : vector<8xf32> to vector<8x1xf32>
    %91 = arith.truncf %88 : vector<8x8xf32> to vector<8x8xbf16>
    %cst_51 = arith.constant dense<0.000000e+00> : vector<8x8xf32>
    %92 = tpu.matmul %91, %82, %cst_51 {dimension_numbers = #tpu.dot_dimension_numbers<[1], [0], [0], [1], [0, 0, 1, 1], [], []>} : vector<8x8xbf16>, vector<8x8xbf16>, vector<8x8xf32> -> vector<8x8xf32>
    %93 = tpu.reciprocal %90 {approx = true} : vector<8x1xf32> -> vector<8x1xf32>
    %94 = vector.broadcast %93 : vector<8x1xf32> to vector<8x8xf32>
    %95 = arith.mulf %92, %94 : vector<8x8xf32>
    %96 = arith.truncf %95 : vector<8x8xf32> to vector<8x8xbf16>
    %c0_52 = arith.constant 0 : index
    %c0_53 = arith.constant 0 : index
    %c24_54 = arith.constant 24 : index
    %97 = vector.load %arg2[%c0_52, %c0_53, %c24_54] : memref<1x8x32xbf16, #tpu.memory_space<vmem>>, vector<1x8x8xbf16>
    %98 = vector.shape_cast %97 : vector<1x8x8xbf16> to vector<8x8xbf16>
    %99 = vector.shape_cast %96 : vector<8x8xbf16> to vector<1x8x8xbf16>
    tpu.vector_store %arg2[%c0_52, %c0_53, %c24_54], %99 {strides = array<i32>} : memref<1x8x32xbf16, #tpu.memory_space<vmem>>, vector<1x8x8xbf16>,
    return
  }
  func.func @transform_0(%arg0: i32) -> (i32, i32, i32) {
    %c0_i32 = arith.constant 0 : i32
    %c0_i32_0 = arith.constant 0 : i32
    %c0_i32_1 = arith.constant 0 : i32
    return %arg0, %c0_i32, %c0_i32_0 : i32, i32, i32
  }
  func.func @transform_1(%arg0: i32) -> (i32, i32, i32) {
    %c0_i32 = arith.constant 0 : i32
    %c0_i32_0 = arith.constant 0 : i32
    %c0_i32_1 = arith.constant 0 : i32
    return %arg0, %c0_i32, %c0_i32_0 : i32, i32, i32
  }
}

module attributes {stable_mosaic.version = 11 : i64} {
  func.func @linear_kernel(%arg0: i32, %arg1: i32, %arg2: memref<16x32xbf16, #tpu.memory_space<vmem>>, %arg3: memref<32x128xbf16, #tpu.memory_space<vmem>>, %arg4: memref<1x128xf32, #tpu.memory_space<vmem>>, %arg5: memref<16x128xf32, #tpu.memory_space<vmem>>) attributes {dimension_semantics = [#tpu.dimension_semantics<parallel>, #tpu.dimension_semantics<parallel>], iteration_bounds = array<i64: 1, 1>, scalar_prefetch = 0 : i64, scratch_operands = 0 : i64, tpu.core_type = #tpu.core_type<tc>, window_params = [{transform_indices = @transform_0, window_bounds = array<i64: 16, 32>}, {transform_indices = @transform_1, window_bounds = array<i64: 32, 128>}, {transform_indices = @transform_2, window_bounds = array<i64: 1, 128>}, {transform_indices = @transform_3, window_bounds = array<i64: 16, 128>}]} {
    %c0 = arith.constant 0 : index
    %c0_0 = arith.constant 0 : index
    %0 = vector.load %arg2[%c0, %c0_0] : memref<16x32xbf16, #tpu.memory_space<vmem>>, vector<16x32xbf16>
    %c0_1 = arith.constant 0 : index
    %c0_2 = arith.constant 0 : index
    %1 = vector.load %arg3[%c0_1, %c0_2] : memref<32x128xbf16, #tpu.memory_space<vmem>>, vector<32x128xbf16>
    %cst = arith.constant dense<0.000000e+00> : vector<16x128xf32>
    %2 = tpu.matmul %0, %1, %cst {dimension_numbers = #tpu.dot_dimension_numbers<[1], [0], [0], [1], [0, 0, 1, 1], [], []>} : vector<16x32xbf16>, vector<32x128xbf16>, vector<16x128xf32> -> vector<16x128xf32>
    %c0_3 = arith.constant 0 : index
    %c0_4 = arith.constant 0 : index
    %3 = vector.load %arg4[%c0_3, %c0_4] : memref<1x128xf32, #tpu.memory_space<vmem>>, vector<1x128xf32>
    %4 = vector.broadcast %3 : vector<1x128xf32> to vector<16x128xf32>
    %5 = arith.addf %2, %4 : vector<16x128xf32>
    %c0_5 = arith.constant 0 : index
    %c0_6 = arith.constant 0 : index
    %6 = vector.load %arg5[%c0_5, %c0_6] : memref<16x128xf32, #tpu.memory_space<vmem>>, vector<16x128xf32>
    tpu.vector_store %arg5[%c0_5, %c0_6], %5 {strides = array<i32>} : memref<16x128xf32, #tpu.memory_space<vmem>>, vector<16x128xf32>,
    return
  }
  func.func @transform_0(%arg0: i32, %arg1: i32) -> (i32, i32) {
    %c0_i32 = arith.constant 0 : i32
    %c0_i32_0 = arith.constant 0 : i32
    return %arg1, %c0_i32 : i32, i32
  }
  func.func @transform_1(%arg0: i32, %arg1: i32) -> (i32, i32) {
    %c0_i32 = arith.constant 0 : i32
    %c0_i32_0 = arith.constant 0 : i32
    return %c0_i32, %arg0 : i32, i32
  }
  func.func @transform_2(%arg0: i32, %arg1: i32) -> (i32, i32) {
    %c0_i32 = arith.constant 0 : i32
    %c0_i32_0 = arith.constant 0 : i32
    return %c0_i32, %arg0 : i32, i32
  }
  func.func @transform_3(%arg0: i32, %arg1: i32) -> (i32, i32) {
    %c0_i32 = arith.constant 0 : i32
    return %arg1, %arg0 : i32, i32
  }
}

</mosaic_0001>

<llo_original>
// kernel: faster_multi_head_attention.5
$region0: #{faster_multi_head_attention.5}
  #allocation0 [shape = 'u32[]', space=smem, size = 0x4, offset = 0x4, fixed_abs, tag = 'smem constant byte address 0x4 - core index']
  #allocation1 [shape = 'u32[144,128]{1,0:T(1,128)}', space=vmem, size = 0x12000, scoped, tag = 'internal scratch']
  %s0 = inlined_call_operand.vmem [shape: bf16[16,32], index: 0, kind: input, shape index: {}]
  %s1 = inlined_call_operand.vmem [shape: bf16[32,128], index: 1, kind: input, shape index: {}]
  %s2 = inlined_call_operand.vmem [shape: f32[1,128], index: 2, kind: input, shape index: {}]
  %s3 = inlined_call_operand.vmem [shape: f32[16,128], index: 3, kind: output, shape index: {}]
  %s4 = sld [smem:[#allocation0]]
  $region22: #{faster_multi_head_attention.5} parent=0
    _
  %s6 = ssub.s32 1, %s4
  %s7 = scalar_select 0, %s6, %s4
  // Predicated region
  $region2: #{faster_multi_head_attention.5} parent=0 // pred_check
    _
  $region3: #{faster_multi_head_attention.5} parent=0 // pred_check_branch
    %9 = sbr.rel (0) target = $region5
  $region4: #{faster_multi_head_attention.5} parent=0 // pred_region
    _
  $region5: #{faster_multi_head_attention.5} parent=0 // pred_fallthru
    _
  // Predicated region
  $region6: #{faster_multi_head_attention.5} parent=0 // pred_check
    _
  $region7: #{faster_multi_head_attention.5} parent=0 // pred_check_branch
    %11 = sbr.rel (0) target = $region9
  $region8: #{faster_multi_head_attention.5} parent=0 // pred_region
    _
  $region9: #{faster_multi_head_attention.5} parent=0 // pred_fallthru
    _
  // Predicated region
  $region10: #{faster_multi_head_attention.5} parent=0 // pred_check
    _
  $region11: #{faster_multi_head_attention.5} parent=0 // pred_check_branch
    %13 = sbr.rel (0) target = $region13
  $region12: #{faster_multi_head_attention.5} parent=0 // pred_region
    _
  $region13: #{faster_multi_head_attention.5} parent=0 // pred_fallthru
    _
  %v15 = vld [vmem:[%s0] sm:$0xf]
  %v16 = vld [vmem:[%s0 + $0x4] sm:$0xf]
  %v17 = vld [vmem:[%s1] sm:$0xf]
  %v18 = vld [vmem:[%s1 + $0x4] sm:$0xf]
  %v19 = vld [vmem:[%s1 + $0x8] sm:$0xf]
  %v20 = vld [vmem:[%s1 + $0xc] sm:$0xf]
  %v21 = vld [vmem:[%s2] sm:$0x1]
  %v23 = vlaneseq
  %v24 = vshrl.u32 %v23, 7
  %v25 = vsub.s32 0, %v24
  %v26 = vrot.slane %v21, %v25
  %v30 = vunpack.c.l.b16 %v15
  %v31 = vunpack.c.l.b16 %v16
  %v32 = vpack.c.b16 %v31, %v30
  %v37 = vunpack.c.l.b16 %v17
  %v38 = vunpack.c.l.b16 %v18
  %v39 = vunpack.c.l.b16 %v19
  %v40 = vunpack.c.l.b16 %v20
  %v41 = vpack.c.b16 %v38, %v37
  %v42 = vpack.c.b16 %v40, %v39
  %vm45 = vcmask 261120
  %v47 = vsel %vm45, %v32, 0
  %49 = vmatprep.subr.bf16.mxu0 0
  %50 = vmatpush1.bf16.msra.mxu0 %v41
  %51 = vmatprep.subr.bf16.mxu0 0
  %52 = vmatpush1.bf16.msra.mxu0 %v42
  %53 = vmatprep.subr.bf16.mxu0 0
  %54 = vmatpush1.bf16.msra.mxu0 0
  %55 = vmatprep.subr.bf16.mxu0 0
  %56 = vmatpush1.bf16.msra.mxu0 0
  %57 = vmatprep.subr.bf16.mxu0 0
  %58 = vmatpush1.bf16.msra.mxu0 0
  %59 = vmatprep.subr.bf16.mxu0 0
  %60 = vmatpush1.bf16.msra.mxu0 0
  %61 = vmatprep.subr.bf16.mxu0 0
  %62 = vmatpush1.bf16.msra.mxu0 0
  %63 = vmatprep.subr.bf16.mxu0 0
  %64 = vmatpush1.bf16.msra.mxu0 0
  %65 = vmatprep.subr.bf16.mxu0 0
  %66 = vmatpush1.bf16.msra.mxu0 0
  %67 = vmatprep.subr.bf16.mxu0 0
  %68 = vmatpush1.bf16.msra.mxu0 0
  %69 = vmatprep.subr.bf16.mxu0 0
  %70 = vmatpush1.bf16.msra.mxu0 0
  %71 = vmatprep.subr.bf16.mxu0 0
  %72 = vmatpush1.bf16.msra.mxu0 0
  %73 = vmatprep.subr.bf16.mxu0 0
  %74 = vmatpush1.bf16.msra.mxu0 0
  %75 = vmatprep.subr.bf16.mxu0 0
  %76 = vmatpush1.bf16.msra.mxu0 0
  %77 = vmatprep.subr.bf16.mxu0 0
  %78 = vmatpush1.bf16.msra.mxu0 0
  %79 = vmatprep.subr.bf16.mxu0 0
  %80 = vmatpush1.bf16.msra.mxu0 0
  %81 = vmatprep.mubr.bf16.mxu0 0
  %82 = vmatmul.mubr.bf16.gmra.mrb[0].mxu0 %v47
  %v83 = vpop.f32.mrb[0].mxu0
  %v84 = vadd.f32 %v26, %v83
  %v85 = vpop.f32.mrb[0].mxu0
  %v86 = vpop.f32.mrb[0].mxu0
  %v87 = vadd.f32 %v26, %v86
  %v88 = vpop.f32.mrb[0].mxu0
  %89 = vdwg.mxu0
  %90 = vst [vmem:[%s3] sm:$0xff] %v84
  %91 = vst [vmem:[%s3 + $0x8] sm:$0xff] %v87
  // Predicated region
  $region14: #{faster_multi_head_attention.5} parent=0 // pred_check
    _
  $region15: #{faster_multi_head_attention.5} parent=0 // pred_check_branch
    %93 = sbr.rel (0) target = $region17
  $region16: #{faster_multi_head_attention.5} parent=0 // pred_region
    _
  $region17: #{faster_multi_head_attention.5} parent=0 // pred_fallthru
    _
  // Predicated region
  $region18: #{faster_multi_head_attention.5} parent=0 // pred_check
    _
  $region19: #{faster_multi_head_attention.5} parent=0 // pred_check_branch
    %95 = sbr.rel (0) target = $region21
  $region20: #{faster_multi_head_attention.5} parent=0 // pred_region
    _
  $region21: #{faster_multi_head_attention.5} parent=0 // pred_fallthru
    _

// kernel: faster_multi_head_attention.3
$region0: #{faster_multi_head_attention.3}
  #allocation0 [shape = 'u32[]', space=smem, size = 0x4, offset = 0x4, fixed_abs, tag = 'smem constant byte address 0x4 - core index']
  #allocation1 [shape = 'u32[144,128]{1,0:T(1,128)}', space=vmem, size = 0x12000, scoped, tag = 'internal scratch']
  %s0 = inlined_call_operand.vmem [shape: bf16[16,32], index: 0, kind: input, shape index: {}]
  %s1 = inlined_call_operand.vmem [shape: bf16[32,128], index: 1, kind: input, shape index: {}]
  %s2 = inlined_call_operand.vmem [shape: f32[1,128], index: 2, kind: input, shape index: {}]
  %s3 = inlined_call_operand.vmem [shape: bf16[16,128], index: 3, kind: output, shape index: {}]
  %s4 = sld [smem:[#allocation0]]
  $region22: #{faster_multi_head_attention.3} parent=0
    _
  %s6 = ssub.s32 1, %s4
  %s7 = scalar_select 0, %s6, %s4
  // Predicated region
  $region2: #{faster_multi_head_attention.3} parent=0 // pred_check
    _
  $region3: #{faster_multi_head_attention.3} parent=0 // pred_check_branch
    %9 = sbr.rel (0) target = $region5
  $region4: #{faster_multi_head_attention.3} parent=0 // pred_region
    _
  $region5: #{faster_multi_head_attention.3} parent=0 // pred_fallthru
    _
  // Predicated region
  $region6: #{faster_multi_head_attention.3} parent=0 // pred_check
    _
  $region7: #{faster_multi_head_attention.3} parent=0 // pred_check_branch
    %11 = sbr.rel (0) target = $region9
  $region8: #{faster_multi_head_attention.3} parent=0 // pred_region
    _
  $region9: #{faster_multi_head_attention.3} parent=0 // pred_fallthru
    _
  // Predicated region
  $region10: #{faster_multi_head_attention.3} parent=0 // pred_check
    _
  $region11: #{faster_multi_head_attention.3} parent=0 // pred_check_branch
    %13 = sbr.rel (0) target = $region13
  $region12: #{faster_multi_head_attention.3} parent=0 // pred_region
    _
  $region13: #{faster_multi_head_attention.3} parent=0 // pred_fallthru
    _
  %v15 = vld [vmem:[%s0] sm:$0xf]
  %v16 = vld [vmem:[%s0 + $0x4] sm:$0xf]
  %v17 = vld [vmem:[%s1] sm:$0xf]
  %v18 = vld [vmem:[%s1 + $0x4] sm:$0xf]
  %v19 = vld [vmem:[%s1 + $0x8] sm:$0xf]
  %v20 = vld [vmem:[%s1 + $0xc] sm:$0xf]
  %v21 = vld [vmem:[%s2] sm:$0x1]
  %v23 = vlaneseq
  %v24 = vshrl.u32 %v23, 7
  %v25 = vsub.s32 0, %v24
  %v26 = vrot.slane %v21, %v25
  %v30 = vunpack.c.l.b16 %v15
  %v31 = vunpack.c.l.b16 %v16
  %v32 = vpack.c.b16 %v31, %v30
  %v37 = vunpack.c.l.b16 %v17
  %v38 = vunpack.c.l.b16 %v18
  %v39 = vunpack.c.l.b16 %v19
  %v40 = vunpack.c.l.b16 %v20
  %v41 = vpack.c.b16 %v38, %v37
  %v42 = vpack.c.b16 %v40, %v39
  %vm45 = vcmask 261120
  %v47 = vsel %vm45, %v32, 0
  %49 = vmatprep.subr.bf16.mxu0 0
  %50 = vmatpush1.bf16.msra.mxu0 %v41
  %51 = vmatprep.subr.bf16.mxu0 0
  %52 = vmatpush1.bf16.msra.mxu0 %v42
  %53 = vmatprep.subr.bf16.mxu0 0
  %54 = vmatpush1.bf16.msra.mxu0 0
  %55 = vmatprep.subr.bf16.mxu0 0
  %56 = vmatpush1.bf16.msra.mxu0 0
  %57 = vmatprep.subr.bf16.mxu0 0
  %58 = vmatpush1.bf16.msra.mxu0 0
  %59 = vmatprep.subr.bf16.mxu0 0
  %60 = vmatpush1.bf16.msra.mxu0 0
  %61 = vmatprep.subr.bf16.mxu0 0
  %62 = vmatpush1.bf16.msra.mxu0 0
  %63 = vmatprep.subr.bf16.mxu0 0
  %64 = vmatpush1.bf16.msra.mxu0 0
  %65 = vmatprep.subr.bf16.mxu0 0
  %66 = vmatpush1.bf16.msra.mxu0 0
  %67 = vmatprep.subr.bf16.mxu0 0
  %68 = vmatpush1.bf16.msra.mxu0 0
  %69 = vmatprep.subr.bf16.mxu0 0
  %70 = vmatpush1.bf16.msra.mxu0 0
  %71 = vmatprep.subr.bf16.mxu0 0
  %72 = vmatpush1.bf16.msra.mxu0 0
  %73 = vmatprep.subr.bf16.mxu0 0
  %74 = vmatpush1.bf16.msra.mxu0 0
  %75 = vmatprep.subr.bf16.mxu0 0
  %76 = vmatpush1.bf16.msra.mxu0 0
  %77 = vmatprep.subr.bf16.mxu0 0
  %78 = vmatpush1.bf16.msra.mxu0 0
  %79 = vmatprep.subr.bf16.mxu0 0
  %80 = vmatpush1.bf16.msra.mxu0 0
  %81 = vmatprep.mubr.bf16.mxu0 0
  %82 = vmatmul.mubr.bf16.gmra.mrb[0].mxu0 %v47
  %v83 = vpop.f32.mrb[0].mxu0
  %v84 = vadd.f32 %v26, %v83
  %v85 = vpop.f32.mrb[0].mxu0
  %v86 = vpop.f32.mrb[0].mxu0
  %v87 = vadd.f32 %v26, %v86
  %v88 = vpop.f32.mrb[0].mxu0
  %89 = vdwg.mxu0
  %v90 = vpack.c.bf16 %v87, %v84
  %v92 = vunpack.c.l.b16 %v90
  %v93 = vunpack.c.h.b16 %v90
  %v94 = vpack.c.b16 %v92, %v92
  %v95 = vpack.c.b16 %v93, %v93
  %98 = vst [vmem:[%s3] sm:$0xf] %v94
  %99 = vst [vmem:[%s3 + $0x4] sm:$0xf] %v95
  // Predicated region
  $region14: #{faster_multi_head_attention.3} parent=0 // pred_check
    _
  $region15: #{faster_multi_head_attention.3} parent=0 // pred_check_branch
    %101 = sbr.rel (0) target = $region17
  $region16: #{faster_multi_head_attention.3} parent=0 // pred_region
    _
  $region17: #{faster_multi_head_attention.3} parent=0 // pred_fallthru
    _
  // Predicated region
  $region18: #{faster_multi_head_attention.3} parent=0 // pred_check
    _
  $region19: #{faster_multi_head_attention.3} parent=0 // pred_check_branch
    %103 = sbr.rel (0) target = $region21
  $region20: #{faster_multi_head_attention.3} parent=0 // pred_region
    _
  $region21: #{faster_multi_head_attention.3} parent=0 // pred_fallthru
    _

// kernel: faster_multi_head_attention.4
$region0: #{faster_multi_head_attention.4}
  #allocation0 [shape = 'u32[]', space=smem, size = 0x4, offset = 0x4, fixed_abs, tag = 'smem constant byte address 0x4 - core index']
  #allocation1 [shape = 'u32[144,128]{1,0:T(1,128)}', space=vmem, size = 0x12000, scoped, tag = 'internal scratch']
  %s0 = inlined_call_operand.vmem [shape: bf16[2,8,96], index: 0, kind: input, shape index: {}]
  %s1 = inlined_call_operand.vmem [shape: bf16[2,8,32], index: 1, kind: output, shape index: {}]
  %s2 = sld [smem:[#allocation0]]
  $region37: #{faster_multi_head_attention.4} parent=0
    _
  %s4 = ssub.s32 1, %s2
  %s5 = scalar_select 0, %s4, %s2
  loop: start=0, step=1, limit=4
  $region2: #{faster_multi_head_attention.4} parent=0 // loop_pre_header
    _
  $region3: #{faster_multi_head_attention.4} parent=0 // loop_header
    %s7 = sphi 0, %s11
    %p8 = scmp.ge.s32.totalorder %s7, 4
    %s17 = sphi 0, %s19
    %s20 = sphi 0, %s17
    %s21 = sphi 0, %s20
    %s37 = sphi 0, %s21
    %s43 = sphi 0, %s45
    %s46 = sphi 0, %s43
    %s47 = sphi 0, %s46
    %s63 = sphi 0, %s47
  $region4: #{faster_multi_head_attention.4} parent=0 // loop_header_branch
    %10 = sbr.rel (%p8) target = $region8
  $region5: #{faster_multi_head_attention.4} parent=0 // loop_body
    %s12 = ssub.s32 %s7, 1
    %s13 = ssub.s32 %s7, 2
    %s14 = sadd.s32 %s7, 1
    %s15 = ssub.s32 %s7, %s14
    %p16 = scmp.eq.s32.totalorder %s15, 0
    %s18 = sadd.s32 %s17, 1
    %s19 = scalar_select %p16, %s17, %s18
    %p22 = pneg %p16
    %p23 = scmp.eq.s32.totalorder %s7, 1
    %p24 = por %p22, %p23
    %p25 = scmp.ne.s32.totalorder %s17, %s20
    %p26 = scmp.eq.s32.totalorder %s7, 0
    %p27 = por %p25, %p26
    %p28 = scmp.ne.s32.totalorder %s17, %s20
    %p29 = scmp.eq.s32.totalorder %s12, 1
    %p30 = por %p28, %p29
    %p31 = scmp.ne.s32.totalorder %s20, %s21
    %p32 = scmp.eq.s32.totalorder %s12, 0
    %p33 = por %p31, %p32
    %p34 = scmp.ne.s32.totalorder %s20, %s21
    %p35 = scmp.eq.s32.totalorder %s13, 1
    %p36 = por %p34, %p35
    %p38 = scmp.ne.s32.totalorder %s21, %s37
    %p39 = scmp.eq.s32.totalorder %s13, 0
    %p40 = por %p38, %p39
    %s41 = ssub.s32 %s7, %s14
    %p42 = scmp.eq.s32.totalorder %s41, 0
    %s44 = sadd.s32 %s43, 1
    %s45 = scalar_select %p42, %s43, %s44
    %p48 = pneg %p42
    %p49 = scmp.eq.s32.totalorder %s7, 1
    %p50 = por %p48, %p49
    %p51 = scmp.ne.s32.totalorder %s43, %s46
    %p52 = scmp.eq.s32.totalorder %s7, 0
    %p53 = por %p51, %p52
    %p54 = scmp.ne.s32.totalorder %s43, %s46
    %p55 = scmp.eq.s32.totalorder %s12, 1
    %p56 = por %p54, %p55
    %p57 = scmp.ne.s32.totalorder %s46, %s47
    %p58 = scmp.eq.s32.totalorder %s12, 0
    %p59 = por %p57, %p58
    %p60 = scmp.ne.s32.totalorder %s46, %s47
    %p61 = scmp.eq.s32.totalorder %s13, 1
    %p62 = por %p60, %p61
    %p64 = scmp.ne.s32.totalorder %s47, %s63
    %p65 = scmp.eq.s32.totalorder %s13, 0
    %p66 = por %p64, %p65
    %p67 = scmp.le.s32.totalorder 1, %s7
    %p68 = scmp.lt.s32.totalorder %s7, 3
    %p69 = pnand %p67, %p68
    %p70 = pneg %p69
    // Predicated region
    $region9: #{faster_multi_head_attention.4} parent=5 // pred_check
      _
    $region10: #{faster_multi_head_attention.4} parent=5 // pred_check_branch
      %72 = sbr.rel (%p69) target = $region12
    $region11: #{faster_multi_head_attention.4} parent=5 // pred_region
      %s73 = ssub.s32 %s7, 1
    $region12: #{faster_multi_head_attention.4} parent=5 // pred_fallthru
      _
    %p74 = scmp.lt.s32.totalorder %s7, 2
    // Predicated region
    $region13: #{faster_multi_head_attention.4} parent=5 // pred_check
      %p75 = pneg %p74
    $region14: #{faster_multi_head_attention.4} parent=5 // pred_check_branch
      %77 = sbr.rel (%p75) target = $region16
    $region15: #{faster_multi_head_attention.4} parent=5 // pred_region
      // Predicated region
      $region17: #{faster_multi_head_attention.4} parent=15 // pred_check
        %p78 = pneg %p27
      $region18: #{faster_multi_head_attention.4} parent=15 // pred_check_branch
        %80 = sbr.rel (%p78) target = $region20
      $region19: #{faster_multi_head_attention.4} parent=15 // pred_region
        %p81 = scmp.lt.s32.totalorder %s7, 1
        %s82 = scalar_select %p81, %s7, 1
        %s83 = smul.addr %s82, 4
        %s84 = scalar_lea.vmem %s0, %s83
      $region20: #{faster_multi_head_attention.4} parent=15 // pred_fallthru
        _
    $region16: #{faster_multi_head_attention.4} parent=5 // pred_fallthru
      _
    %p85 = scmp.le.s32.totalorder 1, %s7
    %p86 = scmp.lt.s32.totalorder %s7, 3
    %p87 = pnand %p85, %p86
    %p88 = pneg %p87
    // Predicated region
    $region21: #{faster_multi_head_attention.4} parent=5 // pred_check
      _
    $region22: #{faster_multi_head_attention.4} parent=5 // pred_check_branch
      %90 = sbr.rel (%p87) target = $region24
    $region23: #{faster_multi_head_attention.4} parent=5 // pred_region
      %s91 = ssub.s32 %s7, 1
      %p92 = scmp.lt.s32.totalorder %s12, 1
      %s93 = scalar_select %p92, %s12, 1
      %s94 = smul.addr %s93, 4
      %s95 = scalar_lea.vmem %s0, %s94
      %p96 = pneg %p33
      %p97 = pneg %p30
      %p98 = pneg %p59
      %p99 = pneg %p56
      %p100 = scmp.lt.s32.totalorder %s12, 1
      %s101 = scalar_select %p100, %s12, 1
      %s102 = smul.addr %s101, 4
      %s103 = scalar_lea.vmem %s1, %s102
      %p104 = scmp.lt.s32.totalorder %s12, 1
      %s105 = scalar_select %p104, %s12, 1
      %s106 = smul.addr %s105, 4
      %s107 = scalar_lea.vmem %s0, %s106
      %p108 = scmp.lt.s32.totalorder %s12, 1
      %s109 = scalar_select %p108, %s12, 1
      %s110 = smul.addr %s109, 4
      %s111 = scalar_lea.vmem %s1, %s110
      %v114 = vld [vmem:[%s107] sm:$0xf]
      %v115 = vmul.bf16 %v114, 1052065461
      %v117 = vunpack.c.l.b16 %v114
      %v118 = vpack.c.b16 %v117, %v117
      %119 = vrot.lane.b32.xlu0 %v118, 96
      %v120 = vpop.permute.xlu0 %119
      %vm121 = vcmask 64512
      %v123 = vsel %vm121, %v115, 0
      %v126 = vsel %vm121, %v120, 0
      %128 = vmatprep.subr.bf16.mxu0 0
      %129 = vmatpush1.bf16.xpose.msra.mxu0 %v126
      %130 = vmatprep.subr.bf16.mxu0 0
      %131 = vmatpush1.bf16.xpose.msra.mxu0 0
      %132 = vmatprep.subr.bf16.mxu0 0
      %133 = vmatpush1.bf16.xpose.msra.mxu0 0
      %134 = vmatprep.subr.bf16.mxu0 0
      %135 = vmatpush1.bf16.xpose.msra.mxu0 0
      %136 = vmatprep.subr.bf16.mxu0 0
      %137 = vmatpush1.bf16.xpose.msra.mxu0 0
      %138 = vmatprep.subr.bf16.mxu0 0
      %139 = vmatpush1.bf16.xpose.msra.mxu0 0
      %140 = vmatprep.subr.bf16.mxu0 0
      %141 = vmatpush1.bf16.xpose.msra.mxu0 0
      %142 = vmatprep.subr.bf16.mxu0 0
      %143 = vmatpush1.bf16.xpose.msra.mxu0 0
      %144 = vmatprep.subr.bf16.mxu0 0
      %145 = vmatpush1.bf16.xpose.msra.mxu0 0
      %146 = vmatprep.subr.bf16.mxu0 0
      %147 = vmatpush1.bf16.xpose.msra.mxu0 0
      %148 = vmatprep.subr.bf16.mxu0 0
      %149 = vmatpush1.bf16.xpose.msra.mxu0 0
      %150 = vmatprep.subr.bf16.mxu0 0
      %151 = vmatpush1.bf16.xpose.msra.mxu0 0
      %152 = vmatprep.subr.bf16.mxu0 0
      %153 = vmatpush1.bf16.xpose.msra.mxu0 0
      %154 = vmatprep.subr.bf16.mxu0 0
      %155 = vmatpush1.bf16.xpose.msra.mxu0 0
      %156 = vmatprep.subr.bf16.mxu0 0
      %157 = vmatpush1.bf16.xpose.msra.mxu0 0
      %158 = vmatprep.subr.bf16.mxu0 0
      %159 = vmatpush1.bf16.xpose.msra.mxu0 0
      %160 = vmatprep.mubr.bf16.mxu0 0
      %161 = vmatmul.mubr.bf16.gmra.mrb[0].mxu0 %v123
      %v162 = vpop.f32.mrb[0].mxu0
      %v163 = vadd.f32 0.0, %v162
      %v164 = vpop.f32.mrb[0].mxu0
      %v165 = vpop.f32.mrb[0].mxu0
      %v166 = vpop.f32.mrb[0].mxu0
      %167 = vdwg.mxu0
      %v168 = vsel %vm121, %v163, -inf
      %169 = vmax.xlane.f32.xlu0 %v168
      %v170 = vpop.xlane.xlu0 %169
      %v171 = vsub.f32 %v163, %v170
      %v172 = vmul.f32 %v171, 1.442695
      %v173 = vpow.pop %v172
      %v174 = vsel %vm121, %v173, 0.0
      %175 = vadd.xlane.f32.xlu0 %v174
      %v176 = vpop.xlane.xlu0 %175
      %v177 = vpack.c.bf16 %v173, %v173
      %178 = vrot.lane.b32.xlu0 %v118, 64
      %v179 = vpop.permute.xlu0 %178
      %v181 = vsel %vm121, %v177, 0
      %vm183 = vcmask 1043456
      %v185 = vsel %vm183, %v179, 0
      %187 = vmatprep.subr.bf16.mxu0 0
      %188 = vmatpush1.bf16.msra.mxu0 %v185
      %189 = vmatprep.subr.bf16.mxu0 0
      %190 = vmatpush1.bf16.msra.mxu0 0
      %191 = vmatprep.subr.bf16.mxu0 0
      %192 = vmatpush1.bf16.msra.mxu0 0
      %193 = vmatprep.subr.bf16.mxu0 0
      %194 = vmatpush1.bf16.msra.mxu0 0
      %195 = vmatprep.subr.bf16.mxu0 0
      %196 = vmatpush1.bf16.msra.mxu0 0
      %197 = vmatprep.subr.bf16.mxu0 0
      %198 = vmatpush1.bf16.msra.mxu0 0
      %199 = vmatprep.subr.bf16.mxu0 0
      %200 = vmatpush1.bf16.msra.mxu0 0
      %201 = vmatprep.subr.bf16.mxu0 0
      %202 = vmatpush1.bf16.msra.mxu0 0
      %203 = vmatprep.subr.bf16.mxu0 0
      %204 = vmatpush1.bf16.msra.mxu0 0
      %205 = vmatprep.subr.bf16.mxu0 0
      %206 = vmatpush1.bf16.msra.mxu0 0
      %207 = vmatprep.subr.bf16.mxu0 0
      %208 = vmatpush1.bf16.msra.mxu0 0
      %209 = vmatprep.subr.bf16.mxu0 0
      %210 = vmatpush1.bf16.msra.mxu0 0
      %211 = vmatprep.subr.bf16.mxu0 0
      %212 = vmatpush1.bf16.msra.mxu0 0
      %213 = vmatprep.subr.bf16.mxu0 0
      %214 = vmatpush1.bf16.msra.mxu0 0
      %215 = vmatprep.subr.bf16.mxu0 0
      %216 = vmatpush1.bf16.msra.mxu0 0
      %217 = vmatprep.subr.bf16.mxu0 0
      %218 = vmatpush1.bf16.msra.mxu0 0
      %219 = vmatprep.mubr.bf16.mxu0 0
      %220 = vmatmul.mubr.bf16.gmra.mrb[0].mxu0 %v181
      %v221 = vpop.f32.mrb[0].mxu0
      %v222 = vadd.f32 0.0, %v221
      %v223 = vpop.f32.mrb[0].mxu0
      %v224 = vpop.f32.mrb[0].mxu0
      %v225 = vpop.f32.mrb[0].mxu0
      %226 = vdwg.mxu0
      %v227 = vrcp.pop %v176
      %v228 = vmul.f32 %v222, %v227
      %v229 = vpack.c.bf16 %v228, %v228
      %vm230 = vcmask 60416
      %231 = vst.msk [vmem:[%s111] sm:$0xf] %vm230, %v229
      %v232 = vld [vmem:[%s107] sm:$0xf]
      %v233 = vmul.bf16 %v232, 1052065461
      %v235 = vunpack.c.l.b16 %v233
      %v236 = vpack.c.b16 %v235, %v235
      %237 = vrot.lane.b32.xlu0 %v236, 120
      %v238 = vpop.permute.xlu0 %237
      %v240 = vunpack.c.l.b16 %v232
      %v241 = vpack.c.b16 %v240, %v240
      %242 = vrot.lane.b32.xlu0 %v241, 88
      %v243 = vpop.permute.xlu0 %242
      %v245 = vsel %vm121, %v238, 0
      %v248 = vsel %vm121, %v243, 0
      %250 = vmatprep.subr.bf16.mxu0 0
      %251 = vmatpush1.bf16.xpose.msra.mxu0 %v248
      %252 = vmatprep.subr.bf16.mxu0 0
      %253 = vmatpush1.bf16.xpose.msra.mxu0 0
      %254 = vmatprep.subr.bf16.mxu0 0
      %255 = vmatpush1.bf16.xpose.msra.mxu0 0
      %256 = vmatprep.subr.bf16.mxu0 0
      %257 = vmatpush1.bf16.xpose.msra.mxu0 0
      %258 = vmatprep.subr.bf16.mxu0 0
      %259 = vmatpush1.bf16.xpose.msra.mxu0 0
      %260 = vmatprep.subr.bf16.mxu0 0
      %261 = vmatpush1.bf16.xpose.msra.mxu0 0
      %262 = vmatprep.subr.bf16.mxu0 0
      %263 = vmatpush1.bf16.xpose.msra.mxu0 0
      %264 = vmatprep.subr.bf16.mxu0 0
      %265 = vmatpush1.bf16.xpose.msra.mxu0 0
      %266 = vmatprep.subr.bf16.mxu0 0
      %267 = vmatpush1.bf16.xpose.msra.mxu0 0
      %268 = vmatprep.subr.bf16.mxu0 0
      %269 = vmatpush1.bf16.xpose.msra.mxu0 0
      %270 = vmatprep.subr.bf16.mxu0 0
      %271 = vmatpush1.bf16.xpose.msra.mxu0 0
      %272 = vmatprep.subr.bf16.mxu0 0
      %273 = vmatpush1.bf16.xpose.msra.mxu0 0
      %274 = vmatprep.subr.bf16.mxu0 0
      %275 = vmatpush1.bf16.xpose.msra.mxu0 0
      %276 = vmatprep.subr.bf16.mxu0 0
      %277 = vmatpush1.bf16.xpose.msra.mxu0 0
      %278 = vmatprep.subr.bf16.mxu0 0
      %279 = vmatpush1.bf16.xpose.msra.mxu0 0
      %280 = vmatprep.subr.bf16.mxu0 0
      %281 = vmatpush1.bf16.xpose.msra.mxu0 0
      %282 = vmatprep.mubr.bf16.mxu0 0
      %283 = vmatmul.mubr.bf16.gmra.mrb[0].mxu0 %v245
      %v284 = vpop.f32.mrb[0].mxu0
      %v285 = vadd.f32 0.0, %v284
      %v286 = vpop.f32.mrb[0].mxu0
      %v287 = vpop.f32.mrb[0].mxu0
      %v288 = vpop.f32.mrb[0].mxu0
      %289 = vdwg.mxu0
      %v290 = vsel %vm121, %v285, -inf
      %291 = vmax.xlane.f32.xlu0 %v290
      %v292 = vpop.xlane.xlu0 %291
      %v293 = vsub.f32 %v285, %v292
      %v294 = vmul.f32 %v293, 1.442695
      %v295 = vpow.pop %v294
      %v296 = vsel %vm121, %v295, 0.0
      %297 = vadd.xlane.f32.xlu0 %v296
      %v298 = vpop.xlane.xlu0 %297
      %v299 = vpack.c.bf16 %v295, %v295
      %300 = vrot.lane.b32.xlu0 %v241, 56
      %v301 = vpop.permute.xlu0 %300
      %v303 = vsel %vm121, %v299, 0
      %v306 = vsel %vm183, %v301, 0
      %308 = vmatprep.subr.bf16.mxu0 0
      %309 = vmatpush1.bf16.msra.mxu0 %v306
      %310 = vmatprep.subr.bf16.mxu0 0
      %311 = vmatpush1.bf16.msra.mxu0 0
      %312 = vmatprep.subr.bf16.mxu0 0
      %313 = vmatpush1.bf16.msra.mxu0 0
      %314 = vmatprep.subr.bf16.mxu0 0
      %315 = vmatpush1.bf16.msra.mxu0 0
      %316 = vmatprep.subr.bf16.mxu0 0
      %317 = vmatpush1.bf16.msra.mxu0 0
      %318 = vmatprep.subr.bf16.mxu0 0
      %319 = vmatpush1.bf16.msra.mxu0 0
      %320 = vmatprep.subr.bf16.mxu0 0
      %321 = vmatpush1.bf16.msra.mxu0 0
      %322 = vmatprep.subr.bf16.mxu0 0
      %323 = vmatpush1.bf16.msra.mxu0 0
      %324 = vmatprep.subr.bf16.mxu0 0
      %325 = vmatpush1.bf16.msra.mxu0 0
      %326 = vmatprep.subr.bf16.mxu0 0
      %327 = vmatpush1.bf16.msra.mxu0 0
      %328 = vmatprep.subr.bf16.mxu0 0
      %329 = vmatpush1.bf16.msra.mxu0 0
      %330 = vmatprep.subr.bf16.mxu0 0
      %331 = vmatpush1.bf16.msra.mxu0 0
      %332 = vmatprep.subr.bf16.mxu0 0
      %333 = vmatpush1.bf16.msra.mxu0 0
      %334 = vmatprep.subr.bf16.mxu0 0
      %335 = vmatpush1.bf16.msra.mxu0 0
      %336 = vmatprep.subr.bf16.mxu0 0
      %337 = vmatpush1.bf16.msra.mxu0 0
      %338 = vmatprep.subr.bf16.mxu0 0
      %339 = vmatpush1.bf16.msra.mxu0 0
      %340 = vmatprep.mubr.bf16.mxu0 0
      %341 = vmatmul.mubr.bf16.gmra.mrb[0].mxu0 %v303
      %v342 = vpop.f32.mrb[0].mxu0
      %v343 = vadd.f32 0.0, %v342
      %v344 = vpop.f32.mrb[0].mxu0
      %v345 = vpop.f32.mrb[0].mxu0
      %v346 = vpop.f32.mrb[0].mxu0
      %347 = vdwg.mxu0
      %v348 = vrcp.pop %v298
      %v349 = vmul.f32 %v343, %v348
      %v350 = vpack.c.bf16 %v349, %v349
      %v352 = vunpack.c.l.b16 %v350
      %v353 = vpack.c.b16 %v352, %v352
      %354 = vrot.lane.b32.xlu0 %v353, 8
      %v355 = vpop.permute.xlu0 %354
      %vm357 = vcmask 126016
      %358 = vst.msk [vmem:[%s111] sm:$0xf] %vm357, %v355
      %v359 = vld [vmem:[%s107] sm:$0xf]
      %v360 = vmul.bf16 %v359, 1052065461
      %v362 = vunpack.c.l.b16 %v360
      %v363 = vpack.c.b16 %v362, %v362
      %364 = vrot.lane.b32.xlu0 %v363, 112
      %v365 = vpop.permute.xlu0 %364
      %v367 = vunpack.c.l.b16 %v359
      %v368 = vpack.c.b16 %v367, %v367
      %369 = vrot.lane.b32.xlu0 %v368, 80
      %v370 = vpop.permute.xlu0 %369
      %v372 = vsel %vm121, %v365, 0
      %v375 = vsel %vm121, %v370, 0
      %377 = vmatprep.subr.bf16.mxu0 0
      %378 = vmatpush1.bf16.xpose.msra.mxu0 %v375
      %379 = vmatprep.subr.bf16.mxu0 0
      %380 = vmatpush1.bf16.xpose.msra.mxu0 0
      %381 = vmatprep.subr.bf16.mxu0 0
      %382 = vmatpush1.bf16.xpose.msra.mxu0 0
      %383 = vmatprep.subr.bf16.mxu0 0
      %384 = vmatpush1.bf16.xpose.msra.mxu0 0
      %385 = vmatprep.subr.bf16.mxu0 0
      %386 = vmatpush1.bf16.xpose.msra.mxu0 0
      %387 = vmatprep.subr.bf16.mxu0 0
      %388 = vmatpush1.bf16.xpose.msra.mxu0 0
      %389 = vmatprep.subr.bf16.mxu0 0
      %390 = vmatpush1.bf16.xpose.msra.mxu0 0
      %391 = vmatprep.subr.bf16.mxu0 0
      %392 = vmatpush1.bf16.xpose.msra.mxu0 0
      %393 = vmatprep.subr.bf16.mxu0 0
      %394 = vmatpush1.bf16.xpose.msra.mxu0 0
      %395 = vmatprep.subr.bf16.mxu0 0
      %396 = vmatpush1.bf16.xpose.msra.mxu0 0
      %397 = vmatprep.subr.bf16.mxu0 0
      %398 = vmatpush1.bf16.xpose.msra.mxu0 0
      %399 = vmatprep.subr.bf16.mxu0 0
      %400 = vmatpush1.bf16.xpose.msra.mxu0 0
      %401 = vmatprep.subr.bf16.mxu0 0
      %402 = vmatpush1.bf16.xpose.msra.mxu0 0
      %403 = vmatprep.subr.bf16.mxu0 0
      %404 = vmatpush1.bf16.xpose.msra.mxu0 0
      %405 = vmatprep.subr.bf16.mxu0 0
      %406 = vmatpush1.bf16.xpose.msra.mxu0 0
      %407 = vmatprep.subr.bf16.mxu0 0
      %408 = vmatpush1.bf16.xpose.msra.mxu0 0
      %409 = vmatprep.mubr.bf16.mxu0 0
      %410 = vmatmul.mubr.bf16.gmra.mrb[0].mxu0 %v372
      %v411 = vpop.f32.mrb[0].mxu0
      %v412 = vadd.f32 0.0, %v411
      %v413 = vpop.f32.mrb[0].mxu0
      %v414 = vpop.f32.mrb[0].mxu0
      %v415 = vpop.f32.mrb[0].mxu0
      %416 = vdwg.mxu0
      %v417 = vsel %vm121, %v412, -inf
      %418 = vmax.xlane.f32.xlu0 %v417
      %v419 = vpop.xlane.xlu0 %418
      %v420 = vsub.f32 %v412, %v419
      %v421 = vmul.f32 %v420, 1.442695
      %v422 = vpow.pop %v421
      %v423 = vsel %vm121, %v422, 0.0
      %424 = vadd.xlane.f32.xlu0 %v423
      %v425 = vpop.xlane.xlu0 %424
      %v426 = vpack.c.bf16 %v422, %v422
      %427 = vrot.lane.b32.xlu0 %v368, 48
      %v428 = vpop.permute.xlu0 %427
      %v430 = vsel %vm121, %v426, 0
      %v433 = vsel %vm183, %v428, 0
      %435 = vmatprep.subr.bf16.mxu0 0
      %436 = vmatpush1.bf16.msra.mxu0 %v433
      %437 = vmatprep.subr.bf16.mxu0 0
      %438 = vmatpush1.bf16.msra.mxu0 0
      %439 = vmatprep.subr.bf16.mxu0 0
      %440 = vmatpush1.bf16.msra.mxu0 0
      %441 = vmatprep.subr.bf16.mxu0 0
      %442 = vmatpush1.bf16.msra.mxu0 0
      %443 = vmatprep.subr.bf16.mxu0 0
      %444 = vmatpush1.bf16.msra.mxu0 0
      %445 = vmatprep.subr.bf16.mxu0 0
      %446 = vmatpush1.bf16.msra.mxu0 0
      %447 = vmatprep.subr.bf16.mxu0 0
      %448 = vmatpush1.bf16.msra.mxu0 0
      %449 = vmatprep.subr.bf16.mxu0 0
      %450 = vmatpush1.bf16.msra.mxu0 0
      %451 = vmatprep.subr.bf16.mxu0 0
      %452 = vmatpush1.bf16.msra.mxu0 0
      %453 = vmatprep.subr.bf16.mxu0 0
      %454 = vmatpush1.bf16.msra.mxu0 0
      %455 = vmatprep.subr.bf16.mxu0 0
      %456 = vmatpush1.bf16.msra.mxu0 0
      %457 = vmatprep.subr.bf16.mxu0 0
      %458 = vmatpush1.bf16.msra.mxu0 0
      %459 = vmatprep.subr.bf16.mxu0 0
      %460 = vmatpush1.bf16.msra.mxu0 0
      %461 = vmatprep.subr.bf16.mxu0 0
      %462 = vmatpush1.bf16.msra.mxu0 0
      %463 = vmatprep.subr.bf16.mxu0 0
      %464 = vmatpush1.bf16.msra.mxu0 0
      %465 = vmatprep.subr.bf16.mxu0 0
      %466 = vmatpush1.bf16.msra.mxu0 0
      %467 = vmatprep.mubr.bf16.mxu0 0
      %468 = vmatmul.mubr.bf16.gmra.mrb[0].mxu0 %v430
      %v469 = vpop.f32.mrb[0].mxu0
      %v470 = vadd.f32 0.0, %v469
      %v471 = vpop.f32.mrb[0].mxu0
      %v472 = vpop.f32.mrb[0].mxu0
      %v473 = vpop.f32.mrb[0].mxu0
      %474 = vdwg.mxu0
      %v475 = vrcp.pop %v425
      %v476 = vmul.f32 %v470, %v475
      %v477 = vpack.c.bf16 %v476, %v476
      %v479 = vunpack.c.l.b16 %v477
      %v480 = vpack.c.b16 %v479, %v479
      %481 = vrot.lane.b32.xlu0 %v480, 16
      %v482 = vpop.permute.xlu0 %481
      %vm484 = vcmask 191616
      %485 = vst.msk [vmem:[%s111] sm:$0xf] %vm484, %v482
      %v486 = vld [vmem:[%s107] sm:$0xf]
      %v487 = vmul.bf16 %v486, 1052065461
      %v489 = vunpack.c.l.b16 %v487
      %v490 = vpack.c.b16 %v489, %v489
      %491 = vrot.lane.b32.xlu0 %v490, 104
      %v492 = vpop.permute.xlu0 %491
      %v494 = vunpack.c.l.b16 %v486
      %v495 = vpack.c.b16 %v494, %v494
      %496 = vrot.lane.b32.xlu0 %v495, 72
      %v497 = vpop.permute.xlu0 %496
      %v499 = vsel %vm121, %v492, 0
      %v502 = vsel %vm121, %v497, 0
      %504 = vmatprep.subr.bf16.mxu0 0
      %505 = vmatpush1.bf16.xpose.msra.mxu0 %v502
      %506 = vmatprep.subr.bf16.mxu0 0
      %507 = vmatpush1.bf16.xpose.msra.mxu0 0
      %508 = vmatprep.subr.bf16.mxu0 0
      %509 = vmatpush1.bf16.xpose.msra.mxu0 0
      %510 = vmatprep.subr.bf16.mxu0 0
      %511 = vmatpush1.bf16.xpose.msra.mxu0 0
      %512 = vmatprep.subr.bf16.mxu0 0
      %513 = vmatpush1.bf16.xpose.msra.mxu0 0
      %514 = vmatprep.subr.bf16.mxu0 0
      %515 = vmatpush1.bf16.xpose.msra.mxu0 0
      %516 = vmatprep.subr.bf16.mxu0 0
      %517 = vmatpush1.bf16.xpose.msra.mxu0 0
      %518 = vmatprep.subr.bf16.mxu0 0
      %519 = vmatpush1.bf16.xpose.msra.mxu0 0
      %520 = vmatprep.subr.bf16.mxu0 0
      %521 = vmatpush1.bf16.xpose.msra.mxu0 0
      %522 = vmatprep.subr.bf16.mxu0 0
      %523 = vmatpush1.bf16.xpose.msra.mxu0 0
      %524 = vmatprep.subr.bf16.mxu0 0
      %525 = vmatpush1.bf16.xpose.msra.mxu0 0
      %526 = vmatprep.subr.bf16.mxu0 0
      %527 = vmatpush1.bf16.xpose.msra.mxu0 0
      %528 = vmatprep.subr.bf16.mxu0 0
      %529 = vmatpush1.bf16.xpose.msra.mxu0 0
      %530 = vmatprep.subr.bf16.mxu0 0
      %531 = vmatpush1.bf16.xpose.msra.mxu0 0
      %532 = vmatprep.subr.bf16.mxu0 0
      %533 = vmatpush1.bf16.xpose.msra.mxu0 0
      %534 = vmatprep.subr.bf16.mxu0 0
      %535 = vmatpush1.bf16.xpose.msra.mxu0 0
      %536 = vmatprep.mubr.bf16.mxu0 0
      %537 = vmatmul.mubr.bf16.gmra.mrb[0].mxu0 %v499
      %v538 = vpop.f32.mrb[0].mxu0
      %v539 = vadd.f32 0.0, %v538
      %v540 = vpop.f32.mrb[0].mxu0
      %v541 = vpop.f32.mrb[0].mxu0
      %v542 = vpop.f32.mrb[0].mxu0
      %543 = vdwg.mxu0
      %v544 = vsel %vm121, %v539, -inf
      %545 = vmax.xlane.f32.xlu0 %v544
      %v546 = vpop.xlane.xlu0 %545
      %v547 = vsub.f32 %v539, %v546
      %v548 = vmul.f32 %v547, 1.442695
      %v549 = vpow.pop %v548
      %v550 = vsel %vm121, %v549, 0.0
      %551 = vadd.xlane.f32.xlu0 %v550
      %v552 = vpop.xlane.xlu0 %551
      %v553 = vpack.c.bf16 %v549, %v549
      %554 = vrot.lane.b32.xlu0 %v495, 40
      %v555 = vpop.permute.xlu0 %554
      %v557 = vsel %vm121, %v553, 0
      %v560 = vsel %vm183, %v555, 0
      %562 = vmatprep.subr.bf16.mxu0 0
      %563 = vmatpush1.bf16.msra.mxu0 %v560
      %564 = vmatprep.subr.bf16.mxu0 0
      %565 = vmatpush1.bf16.msra.mxu0 0
      %566 = vmatprep.subr.bf16.mxu0 0
      %567 = vmatpush1.bf16.msra.mxu0 0
      %568 = vmatprep.subr.bf16.mxu0 0
      %569 = vmatpush1.bf16.msra.mxu0 0
      %570 = vmatprep.subr.bf16.mxu0 0
      %571 = vmatpush1.bf16.msra.mxu0 0
      %572 = vmatprep.subr.bf16.mxu0 0
      %573 = vmatpush1.bf16.msra.mxu0 0
      %574 = vmatprep.subr.bf16.mxu0 0
      %575 = vmatpush1.bf16.msra.mxu0 0
      %576 = vmatprep.subr.bf16.mxu0 0
      %577 = vmatpush1.bf16.msra.mxu0 0
      %578 = vmatprep.subr.bf16.mxu0 0
      %579 = vmatpush1.bf16.msra.mxu0 0
      %580 = vmatprep.subr.bf16.mxu0 0
      %581 = vmatpush1.bf16.msra.mxu0 0
      %582 = vmatprep.subr.bf16.mxu0 0
      %583 = vmatpush1.bf16.msra.mxu0 0
      %584 = vmatprep.subr.bf16.mxu0 0
      %585 = vmatpush1.bf16.msra.mxu0 0
      %586 = vmatprep.subr.bf16.mxu0 0
      %587 = vmatpush1.bf16.msra.mxu0 0
      %588 = vmatprep.subr.bf16.mxu0 0
      %589 = vmatpush1.bf16.msra.mxu0 0
      %590 = vmatprep.subr.bf16.mxu0 0
      %591 = vmatpush1.bf16.msra.mxu0 0
      %592 = vmatprep.subr.bf16.mxu0 0
      %593 = vmatpush1.bf16.msra.mxu0 0
      %594 = vmatprep.mubr.bf16.mxu0 0
      %595 = vmatmul.mubr.bf16.gmra.mrb[0].mxu0 %v557
      %v596 = vpop.f32.mrb[0].mxu0
      %v597 = vadd.f32 0.0, %v596
      %v598 = vpop.f32.mrb[0].mxu0
      %v599 = vpop.f32.mrb[0].mxu0
      %v600 = vpop.f32.mrb[0].mxu0
      %601 = vdwg.mxu0
      %v602 = vrcp.pop %v552
      %v603 = vmul.f32 %v597, %v602
      %v604 = vpack.c.bf16 %v603, %v603
      %v606 = vunpack.c.l.b16 %v604
      %v607 = vpack.c.b16 %v606, %v606
      %608 = vrot.lane.b32.xlu0 %v607, 24
      %v609 = vpop.permute.xlu0 %608
      %vm611 = vcmask 257216
      %612 = vst.msk [vmem:[%s111] sm:$0xf] %vm611, %v609
      %p613 = scmp.lt.s32.totalorder %s12, 1
      %s614 = scalar_select %p613, %s12, 1
      %s615 = smul.addr %s614, 4
      %s616 = scalar_lea.vmem %s1, %s615
      // Predicated region
      $region25: #{faster_multi_head_attention.4} parent=23 // pred_check
        %p617 = pneg %p56
      $region26: #{faster_multi_head_attention.4} parent=23 // pred_check_branch
        %619 = sbr.rel (%p617) target = $region28
      $region27: #{faster_multi_head_attention.4} parent=23 // pred_region
        _
      $region28: #{faster_multi_head_attention.4} parent=23 // pred_fallthru
        _
    $region24: #{faster_multi_head_attention.4} parent=5 // pred_fallthru
      _
    %p620 = scmp.le.s32.totalorder 2, %s7
    // Predicated region
    $region29: #{faster_multi_head_attention.4} parent=5 // pred_check
      %p621 = pneg %p620
    $region30: #{faster_multi_head_attention.4} parent=5 // pred_check_branch
      %623 = sbr.rel (%p621) target = $region32
    $region31: #{faster_multi_head_attention.4} parent=5 // pred_region
      %s624 = ssub.s32 %s7, 2
      // Predicated region
      $region33: #{faster_multi_head_attention.4} parent=31 // pred_check
        %p625 = pneg %p62
      $region34: #{faster_multi_head_attention.4} parent=31 // pred_check_branch
        %627 = sbr.rel (%p625) target = $region36
      $region35: #{faster_multi_head_attention.4} parent=31 // pred_region
        %p628 = scmp.lt.s32.totalorder %s13, 1
        %s629 = scalar_select %p628, %s13, 1
        %s630 = smul.addr %s629, 4
        %s631 = scalar_lea.vmem %s1, %s630
      $region36: #{faster_multi_head_attention.4} parent=31 // pred_fallthru
        _
    $region32: #{faster_multi_head_attention.4} parent=5 // pred_fallthru
      _
  $region6: #{faster_multi_head_attention.4} parent=0 // loop_footer
    %s11 = sadd.s32 1, %s7
  $region7: #{faster_multi_head_attention.4} parent=0 // loop_footer_branch
    %6 = sbr.rel target = $region3
  $region8: #{faster_multi_head_attention.4} parent=0 // loop_exit
    _

</llo_original>
